<compile_context>
chip_gen: v7x
topology: tpu7x:2x2x1
jax: 0.10.0
libtpu: 0.0.40
codegen_flags: <defaults>
</compile_context>

<pallas_src>
import jax
import jax.numpy as jnp
from jax.experimental import pallas as pl
from jax.experimental.pallas import tpu as pltpu


def embed_kernel(idx_ref, table_ref, out_ref):
    """One grid step handles `tg` packed output rows.

    idx_ref:   (tg, PACK)     int32   -- PACK token ids per output row
    table_ref: (V, V)         float32 -- full embedding table (resident)
    out_ref:   (tg, PACK * V) float32 -- lane-dense packed logits
    """
    tg, pack = idx_ref.shape
    v = table_ref.shape[0]

    ids = idx_ref[...]                                       # (tg, PACK) int32
    table = table_ref[...]                                   # (V, V) f32
    col = jax.lax.broadcasted_iota(jnp.int32, (tg, v), 1)    # (tg, V)

    parts = []
    for k in range(pack):                                    # static unroll
        onehot = (col == ids[:, k:k + 1]).astype(table.dtype)          # (tg, V)
        parts.append(
            jnp.dot(onehot, table, preferred_element_type=jnp.float32)  # (tg, V)
        )

    packed = parts[0] if pack == 1 else jnp.concatenate(parts, axis=-1)
    out_ref[...] = packed.astype(out_ref.dtype)              # single dense store


def gpt_v1_forward(indices, table, *, max_tile_rows=1024):
    """Pallas implementation of GPT_v1.forward.

    indices: (B, T) int32
    table:   (V, V) float32
    returns: (B, T, V) float32
    """
    B, T = indices.shape
    V = table.shape[0]
    N = B * T

    # Pack PACK tokens per 128-lane output row so stores are lane-dense.
    if V < 128 and 128 % V == 0 and N % (128 // V) == 0:
        pack = 128 // V
    else:
        pack = 1
    G = N // pack                                            # packed rows

    idx2d = indices.reshape(G, pack).astype(jnp.int32)

    # Row tile: a single grid step for small problems (the toy config), else
    # the largest 8-aligned divisor of G under the cap (keeps the
    # double-buffered output tile comfortably inside VMEM on v7x's 64 MiB).
    if G <= max_tile_rows:
        tg = G
    else:
        tg = max((d for d in range(8, max_tile_rows + 1, 8) if G % d == 0),
                 default=G)
    grid = (G // tg,)

    out_packed = pl.pallas_call(
        embed_kernel,
        out_shape=jax.ShapeDtypeStruct((G, pack * V), jnp.float32),
        grid_spec=pltpu.PrefetchScalarGridSpec(
            num_scalar_prefetch=0,
            grid=grid,
            in_specs=[
                # Lane-packed token ids for this row tile.
                pl.BlockSpec((tg, pack), lambda i: (i, 0)),
                # Full embedding table; constant block index -> fetched once.
                pl.BlockSpec((V, V), lambda i: (0, 0)),
            ],
            out_specs=pl.BlockSpec((tg, pack * V), lambda i: (i, 0)),
        ),
        compiler_params=pltpu.CompilerParams(
            dimension_semantics=("parallel",),
        ),
    )(idx2d, table)

    # (G, PACK*V) has identical row-major memory to (N, V): reshape is free.
    return out_packed.reshape(B, T, V)


if __name__ == "__main__":
    # Small shapes consistent with the module: vocab_size = embedding_dim = 32.
    vocab_size = 32
    batch, seq = 2, 8

    key = jax.random.PRNGKey(0)
    k_tab, k_idx = jax.random.split(key)

    # nn.Embedding default init ~ N(0, 1); deterministic synthetic weights.
    table = jax.random.normal(k_tab, (vocab_size, vocab_size), dtype=jnp.float32)
    indices = jax.random.randint(k_idx, (batch, seq), 0, vocab_size, dtype=jnp.int32)

    logits = gpt_v1_forward(indices, table)
    logits = jax.block_until_ready(logits)

    # Sanity check vs plain-JAX gather (nn.Embedding semantics).
    ref = table[indices]
    assert logits.shape == (batch, seq, vocab_size)
    assert jnp.allclose(logits, ref, atol=1e-5), "mismatch vs reference gather"

    print("KERNEL_OK")
</pallas_src>

<mosaic_0001>
module attributes {stable_mosaic.version = 11 : i64} {
  func.func @embed_kernel(%arg0: i32, %arg1: memref<4x4xi32, #tpu.memory_space<vmem>>, %arg2: memref<32x32xf32, #tpu.memory_space<vmem>>, %arg3: memref<4x128xf32, #tpu.memory_space<vmem>>) attributes {dimension_semantics = [#tpu.dimension_semantics<parallel>], iteration_bounds = array<i64: 1>, scalar_prefetch = 0 : i64, scratch_operands = 0 : i64, tpu.core_type = #tpu.core_type<tc>, window_params = [{transform_indices = @transform_0, window_bounds = array<i64: 4, 4>}, {pipeline_mode = #tpu.pipeline_mode<synchronous>, transform_indices = @transform_1, window_bounds = array<i64: 32, 32>}, {transform_indices = @transform_2, window_bounds = array<i64: 4, 128>}]} {
    %c0 = arith.constant 0 : index
    %c0_0 = arith.constant 0 : index
    %0 = vector.load %arg1[%c0, %c0_0] : memref<4x4xi32, #tpu.memory_space<vmem>>, vector<4x4xi32>
    %c0_1 = arith.constant 0 : index
    %c0_2 = arith.constant 0 : index
    %1 = vector.load %arg2[%c0_1, %c0_2] : memref<32x32xf32, #tpu.memory_space<vmem>>, vector<32x32xf32>
    %2 = tpu.iota {dimensions = array<i32: 1>} : vector<4x32xi32>
    %3 = vector.extract_strided_slice %0 {offsets = [0, 0], sizes = [4, 1], strides = [1, 1]} : vector<4x4xi32> to vector<4x1xi32>
    %4 = vector.broadcast %3 : vector<4x1xi32> to vector<4x32xi32>
    %5 = arith.cmpi eq, %2, %4 : vector<4x32xi32>
    %6 = arith.extui %5 : vector<4x32xi1> to vector<4x32xi32>
    %7 = arith.sitofp %6 : vector<4x32xi32> to vector<4x32xf32>
    %cst = arith.constant dense<0.000000e+00> : vector<4x32xf32>
    %8 = tpu.matmul %7, %1, %cst {dimension_numbers = #tpu.dot_dimension_numbers<[1], [0], [0], [1], [0, 0, 1, 1], [], []>} : vector<4x32xf32>, vector<32x32xf32>, vector<4x32xf32> -> vector<4x32xf32>
    %9 = vector.extract_strided_slice %0 {offsets = [0, 1], sizes = [4, 1], strides = [1, 1]} : vector<4x4xi32> to vector<4x1xi32>
    %10 = vector.broadcast %9 : vector<4x1xi32> to vector<4x32xi32>
    %11 = arith.cmpi eq, %2, %10 : vector<4x32xi32>
    %12 = arith.extui %11 : vector<4x32xi1> to vector<4x32xi32>
    %13 = arith.sitofp %12 : vector<4x32xi32> to vector<4x32xf32>
    %cst_3 = arith.constant dense<0.000000e+00> : vector<4x32xf32>
    %14 = tpu.matmul %13, %1, %cst_3 {dimension_numbers = #tpu.dot_dimension_numbers<[1], [0], [0], [1], [0, 0, 1, 1], [], []>} : vector<4x32xf32>, vector<32x32xf32>, vector<4x32xf32> -> vector<4x32xf32>
    %15 = vector.extract_strided_slice %0 {offsets = [0, 2], sizes = [4, 1], strides = [1, 1]} : vector<4x4xi32> to vector<4x1xi32>
    %16 = vector.broadcast %15 : vector<4x1xi32> to vector<4x32xi32>
    %17 = arith.cmpi eq, %2, %16 : vector<4x32xi32>
    %18 = arith.extui %17 : vector<4x32xi1> to vector<4x32xi32>
    %19 = arith.sitofp %18 : vector<4x32xi32> to vector<4x32xf32>
    %cst_4 = arith.constant dense<0.000000e+00> : vector<4x32xf32>
    %20 = tpu.matmul %19, %1, %cst_4 {dimension_numbers = #tpu.dot_dimension_numbers<[1], [0], [0], [1], [0, 0, 1, 1], [], []>} : vector<4x32xf32>, vector<32x32xf32>, vector<4x32xf32> -> vector<4x32xf32>
    %21 = vector.extract_strided_slice %0 {offsets = [0, 3], sizes = [4, 1], strides = [1, 1]} : vector<4x4xi32> to vector<4x1xi32>
    %22 = vector.broadcast %21 : vector<4x1xi32> to vector<4x32xi32>
    %23 = arith.cmpi eq, %2, %22 : vector<4x32xi32>
    %24 = arith.extui %23 : vector<4x32xi1> to vector<4x32xi32>
    %25 = arith.sitofp %24 : vector<4x32xi32> to vector<4x32xf32>
    %cst_5 = arith.constant dense<0.000000e+00> : vector<4x32xf32>
    %26 = tpu.matmul %25, %1, %cst_5 {dimension_numbers = #tpu.dot_dimension_numbers<[1], [0], [0], [1], [0, 0, 1, 1], [], []>} : vector<4x32xf32>, vector<32x32xf32>, vector<4x32xf32> -> vector<4x32xf32>
    %27 = tpu.concatenate %8, %14, %20, %26 in 1 : vector<4x32xf32>, vector<4x32xf32>, vector<4x32xf32>, vector<4x32xf32> -> vector<4x128xf32>
    %c0_6 = arith.constant 0 : index
    %c0_7 = arith.constant 0 : index
    %28 = vector.load %arg3[%c0_6, %c0_7] : memref<4x128xf32, #tpu.memory_space<vmem>>, vector<4x128xf32>
    tpu.vector_store %arg3[%c0_6, %c0_7], %27 {strides = array<i32>} : memref<4x128xf32, #tpu.memory_space<vmem>>, vector<4x128xf32>,
    return
  }
  func.func @transform_0(%arg0: i32) -> (i32, i32) {
    %c0_i32 = arith.constant 0 : i32
    %c0_i32_0 = arith.constant 0 : i32
    return %arg0, %c0_i32 : i32, i32
  }
  func.func @transform_1(%arg0: i32) -> (i32, i32) {
    %c0_i32 = arith.constant 0 : i32
    %c0_i32_0 = arith.constant 0 : i32
    %c0_i32_1 = arith.constant 0 : i32
    return %c0_i32, %c0_i32_0 : i32, i32
  }
  func.func @transform_2(%arg0: i32) -> (i32, i32) {
    %c0_i32 = arith.constant 0 : i32
    %c0_i32_0 = arith.constant 0 : i32
    return %arg0, %c0_i32 : i32, i32
  }
}

</mosaic_0001>

<llo_original>
// kernel: tpu_custom_call.1
$region0: #{tpu_custom_call.1}
  #allocation0 [shape = 'u32[]', space=smem, size = 0x4, offset = 0x4, fixed_abs, tag = 'smem constant byte address 0x4 - core index']
  #allocation1 [shape = 'u32[144,128]{1,0:T(1,128)}', space=vmem, size = 0x12000, scoped, tag = 'internal scratch']
  %s0 = inlined_call_operand.hbm [shape: s32[4,4], index: 0, kind: input, shape index: {}]
  %s1 = inlined_call_operand.hbm [shape: f32[32,32], index: 1, kind: input, shape index: {}]
  %s2 = inlined_call_operand.hbm [shape: f32[4,128], index: 2, kind: output, shape index: {}]
  %s3 = sld [smem:[#allocation0]]
  $region26: #{tpu_custom_call.1} parent=0
    _
  %s5 = ssub.s32 1, %s3
  %s6 = scalar_select 0, %s5, %s3
  $region1: #{tpu_custom_call.1} parent=0
    #allocation2 [shape = 'u8[2048]{0}', space=vmem, size = 0x800, scoped, tag = 'input window, operand 0, single buffered']
    #allocation3 [shape = 's32[1]{0}', space=sflag, size = 0x4, scoped, tag = 'scoped memory for tpu_custom_call.1']
    #allocation4 [shape = 's32[1]{0}', space=sflag, size = 0x4, scoped, tag = 'scoped memory for tpu_custom_call.1']
    #allocation5 [shape = 'u8[16384]{0}', space=vmem, size = 0x4000, scoped, tag = 'input window, operand 1, single buffered']
    #allocation6 [shape = 's32[1]{0}', space=sflag, size = 0x4, scoped, tag = 'scoped memory for tpu_custom_call.1']
    #allocation7 [shape = 'u8[2048]{0}', space=vmem, size = 0x800, scoped, tag = 'output window, operand 0, single buffered']
    %7 = vsyncpa [#allocation3], 0
    %8 = vsyncpa [#allocation6], 0
    %9 = vsyncpa [#allocation4], 0
    // Predicated region
    $region2: #{tpu_custom_call.1} parent=1 // pred_check
      _
    $region3: #{tpu_custom_call.1} parent=1 // pred_check_branch
      %11 = sbr.rel (0) target = $region5
    $region4: #{tpu_custom_call.1} parent=1 // pred_region
      %s13 = ssub.s32 64, 64
      %14 = vsyncadd [#allocation3], %s13
      %s16 = sshll.u32 [#allocation2], 4
      %s17 = int_to_ptr.vmem [resolvable:$true] %s16
      %19 = dma.hbm_to_vmem [thread:$0]  %s0, 64, %s17, [#allocation3]
    $region5: #{tpu_custom_call.1} parent=1 // pred_fallthru
      _
    // Predicated region
    $region6: #{tpu_custom_call.1} parent=1 // pred_check
      _
    $region7: #{tpu_custom_call.1} parent=1 // pred_check_branch
      %21 = sbr.rel (0) target = $region9
    $region8: #{tpu_custom_call.1} parent=1 // pred_region
      %s23 = ssub.s32 512, 512
      %24 = vsyncadd [#allocation6], %s23
      %s25 = sshll.u32 [#allocation5], 4
      %s26 = int_to_ptr.vmem [resolvable:$true] %s25
      %31 = dma.hbm_to_vmem [thread:$0]  %s1, 512, %s26, [#allocation6], 128, 128, 8
    $region9: #{tpu_custom_call.1} parent=1 // pred_fallthru
      _
    // Predicated region
    $region10: #{tpu_custom_call.1} parent=1 // pred_check
      _
    $region11: #{tpu_custom_call.1} parent=1 // pred_check_branch
      %33 = sbr.rel (0) target = $region13
    $region12: #{tpu_custom_call.1} parent=1 // pred_region
      %34 = dma.done [#allocation3], 64
    $region13: #{tpu_custom_call.1} parent=1 // pred_fallthru
      _
    // Predicated region
    $region14: #{tpu_custom_call.1} parent=1 // pred_check
      _
    $region15: #{tpu_custom_call.1} parent=1 // pred_check_branch
      %36 = sbr.rel (0) target = $region17
    $region16: #{tpu_custom_call.1} parent=1 // pred_region
      %37 = dma.done [#allocation6], 512
    $region17: #{tpu_custom_call.1} parent=1 // pred_fallthru
      _
    %v38 = vld [vmem:[#allocation2] sm:$0xf]
    %v39 = vld [vmem:[#allocation5] sm:$0xff]
    %v40 = vld [vmem:[#allocation5 + $0x8] sm:$0xff]
    %v41 = vld [vmem:[#allocation5 + $0x10] sm:$0xff]
    %v42 = vld [vmem:[#allocation5 + $0x18] sm:$0xff]
    %v43 = vlaneseq
    %v44 = vand.u32 %v43, 127
    %45 = vset.pattern.permute.xlu0 0
    %46 = vperm.xlu0 %45, %v38
    %v47 = vpop.permute.xlu0 %46
    %vm48 = vcmp.eq.s32.totalorder %v44, %v47
    %v49 = vsel %vm48, 1, 0
    %v50 = vcvt.s32.f32 %v49
    %vm51 = vcmask 261120
    %v53 = vsel %vm51, %v50, 0
    %55 = vmatprep.subr.mxu0 0.0
    %56 = vmatpush1.msra.mxu0 %v39
    %57 = vmatprep.subr.mxu0 0.0
    %58 = vmatpush1.msra.mxu0 %v40
    %59 = vmatprep.subr.mxu0 0.0
    %60 = vmatpush1.msra.mxu0 %v41
    %61 = vmatprep.subr.mxu0 0.0
    %62 = vmatpush1.msra.mxu0 %v42
    %63 = vmatprep.subr.mxu0 0.0
    %64 = vmatpush1.msra.mxu0 0.0
    %65 = vmatprep.subr.mxu0 0.0
    %66 = vmatpush1.msra.mxu0 0.0
    %67 = vmatprep.subr.mxu0 0.0
    %68 = vmatpush1.msra.mxu0 0.0
    %69 = vmatprep.subr.mxu0 0.0
    %70 = vmatpush1.msra.mxu0 0.0
    %71 = vmatprep.subr.mxu0 0.0
    %72 = vmatpush1.msra.mxu0 0.0
    %73 = vmatprep.subr.mxu0 0.0
    %74 = vmatpush1.msra.mxu0 0.0
    %75 = vmatprep.subr.mxu0 0.0
    %76 = vmatpush1.msra.mxu0 0.0
    %77 = vmatprep.subr.mxu0 0.0
    %78 = vmatpush1.msra.mxu0 0.0
    %79 = vmatprep.subr.mxu0 0.0
    %80 = vmatpush1.msra.mxu0 0.0
    %81 = vmatprep.subr.mxu0 0.0
    %82 = vmatpush1.msra.mxu0 0.0
    %83 = vmatprep.subr.mxu0 0.0
    %84 = vmatpush1.msra.mxu0 0.0
    %85 = vmatprep.subr.mxu0 0.0
    %86 = vmatpush1.msra.mxu0 0.0
    %87 = vmatprep.subr.mxu0 0.0
    %88 = vmatpush1.msra.mxu0 0.0
    %89 = vmatprep.subr.mxu0 0.0
    %90 = vmatpush1.msra.mxu0 0.0
    %91 = vmatprep.subr.mxu0 0.0
    %92 = vmatpush1.msra.mxu0 0.0
    %93 = vmatprep.subr.mxu0 0.0
    %94 = vmatpush1.msra.mxu0 0.0
    %95 = vmatprep.subr.mxu0 0.0
    %96 = vmatpush1.msra.mxu0 0.0
    %97 = vmatprep.subr.mxu0 0.0
    %98 = vmatpush1.msra.mxu0 0.0
    %99 = vmatprep.subr.mxu0 0.0
    %100 = vmatpush1.msra.mxu0 0.0
    %101 = vmatprep.subr.mxu0 0.0
    %102 = vmatpush1.msra.mxu0 0.0
    %103 = vmatprep.subr.mxu0 0.0
    %104 = vmatpush1.msra.mxu0 0.0
    %105 = vmatprep.subr.mxu0 0.0
    %106 = vmatpush1.msra.mxu0 0.0
    %107 = vmatprep.subr.mxu0 0.0
    %108 = vmatpush1.msra.mxu0 0.0
    %109 = vmatprep.subr.mxu0 0.0
    %110 = vmatpush1.msra.mxu0 0.0
    %111 = vmatprep.subr.mxu0 0.0
    %112 = vmatpush1.msra.mxu0 0.0
    %113 = vmatprep.subr.mxu0 0.0
    %114 = vmatpush1.msra.mxu0 0.0
    %115 = vmatprep.subr.mxu0 0.0
    %116 = vmatpush1.msra.mxu0 0.0
    %117 = vmatprep.subr.mxu0 0.0
    %118 = vmatpush1.msra.mxu0 0.0
    %119 = vmatprep.mubr.f32.mxu0 0.0
    %120 = vmatmul.mubr.f32.gmra.mrb[0].mxu0 %v53
    %v121 = vpop.f32.mrb[0].mxu0
    %v122 = vadd.f32 0.0, %v121
    %v123 = vpop.f32.mrb[0].mxu0
    %124 = vdwg.mxu0
    %125 = vset.pattern.permute.xlu0 1
    %126 = vperm.xlu0 %125, %v38
    %v127 = vpop.permute.xlu0 %126
    %vm128 = vcmp.eq.s32.totalorder %v44, %v127
    %v129 = vsel %vm128, 1, 0
    %v130 = vcvt.s32.f32 %v129
    %v132 = vsel %vm51, %v130, 0
    %134 = vmatprep.subr.mxu0 0.0
    %135 = vmatpush1.msra.mxu0 %v39
    %136 = vmatprep.subr.mxu0 0.0
    %137 = vmatpush1.msra.mxu0 %v40
    %138 = vmatprep.subr.mxu0 0.0
    %139 = vmatpush1.msra.mxu0 %v41
    %140 = vmatprep.subr.mxu0 0.0
    %141 = vmatpush1.msra.mxu0 %v42
    %142 = vmatprep.subr.mxu0 0.0
    %143 = vmatpush1.msra.mxu0 0.0
    %144 = vmatprep.subr.mxu0 0.0
    %145 = vmatpush1.msra.mxu0 0.0
    %146 = vmatprep.subr.mxu0 0.0
    %147 = vmatpush1.msra.mxu0 0.0
    %148 = vmatprep.subr.mxu0 0.0
    %149 = vmatpush1.msra.mxu0 0.0
    %150 = vmatprep.subr.mxu0 0.0
    %151 = vmatpush1.msra.mxu0 0.0
    %152 = vmatprep.subr.mxu0 0.0
    %153 = vmatpush1.msra.mxu0 0.0
    %154 = vmatprep.subr.mxu0 0.0
    %155 = vmatpush1.msra.mxu0 0.0
    %156 = vmatprep.subr.mxu0 0.0
    %157 = vmatpush1.msra.mxu0 0.0
    %158 = vmatprep.subr.mxu0 0.0
    %159 = vmatpush1.msra.mxu0 0.0
    %160 = vmatprep.subr.mxu0 0.0
    %161 = vmatpush1.msra.mxu0 0.0
    %162 = vmatprep.subr.mxu0 0.0
    %163 = vmatpush1.msra.mxu0 0.0
    %164 = vmatprep.subr.mxu0 0.0
    %165 = vmatpush1.msra.mxu0 0.0
    %166 = vmatprep.subr.mxu0 0.0
    %167 = vmatpush1.msra.mxu0 0.0
    %168 = vmatprep.subr.mxu0 0.0
    %169 = vmatpush1.msra.mxu0 0.0
    %170 = vmatprep.subr.mxu0 0.0
    %171 = vmatpush1.msra.mxu0 0.0
    %172 = vmatprep.subr.mxu0 0.0
    %173 = vmatpush1.msra.mxu0 0.0
    %174 = vmatprep.subr.mxu0 0.0
    %175 = vmatpush1.msra.mxu0 0.0
    %176 = vmatprep.subr.mxu0 0.0
    %177 = vmatpush1.msra.mxu0 0.0
    %178 = vmatprep.subr.mxu0 0.0
    %179 = vmatpush1.msra.mxu0 0.0
    %180 = vmatprep.subr.mxu0 0.0
    %181 = vmatpush1.msra.mxu0 0.0
    %182 = vmatprep.subr.mxu0 0.0
    %183 = vmatpush1.msra.mxu0 0.0
    %184 = vmatprep.subr.mxu0 0.0
    %185 = vmatpush1.msra.mxu0 0.0
    %186 = vmatprep.subr.mxu0 0.0
    %187 = vmatpush1.msra.mxu0 0.0
    %188 = vmatprep.subr.mxu0 0.0
    %189 = vmatpush1.msra.mxu0 0.0
    %190 = vmatprep.subr.mxu0 0.0
    %191 = vmatpush1.msra.mxu0 0.0
    %192 = vmatprep.subr.mxu0 0.0
    %193 = vmatpush1.msra.mxu0 0.0
    %194 = vmatprep.subr.mxu0 0.0
    %195 = vmatpush1.msra.mxu0 0.0
    %196 = vmatprep.subr.mxu0 0.0
    %197 = vmatpush1.msra.mxu0 0.0
    %198 = vmatprep.mubr.f32.mxu0 0.0
    %199 = vmatmul.mubr.f32.gmra.mrb[0].mxu0 %v132
    %v200 = vpop.f32.mrb[0].mxu0
    %v201 = vadd.f32 0.0, %v200
    %v202 = vpop.f32.mrb[0].mxu0
    %203 = vdwg.mxu0
    %204 = vset.pattern.permute.xlu0 2
    %205 = vperm.xlu0 %204, %v38
    %v206 = vpop.permute.xlu0 %205
    %vm207 = vcmp.eq.s32.totalorder %v44, %v206
    %v208 = vsel %vm207, 1, 0
    %v209 = vcvt.s32.f32 %v208
    %v211 = vsel %vm51, %v209, 0
    %213 = vmatprep.subr.mxu0 0.0
    %214 = vmatpush1.msra.mxu0 %v39
    %215 = vmatprep.subr.mxu0 0.0
    %216 = vmatpush1.msra.mxu0 %v40
    %217 = vmatprep.subr.mxu0 0.0
    %218 = vmatpush1.msra.mxu0 %v41
    %219 = vmatprep.subr.mxu0 0.0
    %220 = vmatpush1.msra.mxu0 %v42
    %221 = vmatprep.subr.mxu0 0.0
    %222 = vmatpush1.msra.mxu0 0.0
    %223 = vmatprep.subr.mxu0 0.0
    %224 = vmatpush1.msra.mxu0 0.0
    %225 = vmatprep.subr.mxu0 0.0
    %226 = vmatpush1.msra.mxu0 0.0
    %227 = vmatprep.subr.mxu0 0.0
    %228 = vmatpush1.msra.mxu0 0.0
    %229 = vmatprep.subr.mxu0 0.0
    %230 = vmatpush1.msra.mxu0 0.0
    %231 = vmatprep.subr.mxu0 0.0
    %232 = vmatpush1.msra.mxu0 0.0
    %233 = vmatprep.subr.mxu0 0.0
    %234 = vmatpush1.msra.mxu0 0.0
    %235 = vmatprep.subr.mxu0 0.0
    %236 = vmatpush1.msra.mxu0 0.0
    %237 = vmatprep.subr.mxu0 0.0
    %238 = vmatpush1.msra.mxu0 0.0
    %239 = vmatprep.subr.mxu0 0.0
    %240 = vmatpush1.msra.mxu0 0.0
    %241 = vmatprep.subr.mxu0 0.0
    %242 = vmatpush1.msra.mxu0 0.0
    %243 = vmatprep.subr.mxu0 0.0
    %244 = vmatpush1.msra.mxu0 0.0
    %245 = vmatprep.subr.mxu0 0.0
    %246 = vmatpush1.msra.mxu0 0.0
    %247 = vmatprep.subr.mxu0 0.0
    %248 = vmatpush1.msra.mxu0 0.0
    %249 = vmatprep.subr.mxu0 0.0
    %250 = vmatpush1.msra.mxu0 0.0
    %251 = vmatprep.subr.mxu0 0.0
    %252 = vmatpush1.msra.mxu0 0.0
    %253 = vmatprep.subr.mxu0 0.0
    %254 = vmatpush1.msra.mxu0 0.0
    %255 = vmatprep.subr.mxu0 0.0
    %256 = vmatpush1.msra.mxu0 0.0
    %257 = vmatprep.subr.mxu0 0.0
    %258 = vmatpush1.msra.mxu0 0.0
    %259 = vmatprep.subr.mxu0 0.0
    %260 = vmatpush1.msra.mxu0 0.0
    %261 = vmatprep.subr.mxu0 0.0
    %262 = vmatpush1.msra.mxu0 0.0
    %263 = vmatprep.subr.mxu0 0.0
    %264 = vmatpush1.msra.mxu0 0.0
    %265 = vmatprep.subr.mxu0 0.0
    %266 = vmatpush1.msra.mxu0 0.0
    %267 = vmatprep.subr.mxu0 0.0
    %268 = vmatpush1.msra.mxu0 0.0
    %269 = vmatprep.subr.mxu0 0.0
    %270 = vmatpush1.msra.mxu0 0.0
    %271 = vmatprep.subr.mxu0 0.0
    %272 = vmatpush1.msra.mxu0 0.0
    %273 = vmatprep.subr.mxu0 0.0
    %274 = vmatpush1.msra.mxu0 0.0
    %275 = vmatprep.subr.mxu0 0.0
    %276 = vmatpush1.msra.mxu0 0.0
    %277 = vmatprep.mubr.f32.mxu0 0.0
    %278 = vmatmul.mubr.f32.gmra.mrb[0].mxu0 %v211
    %v279 = vpop.f32.mrb[0].mxu0
    %v280 = vadd.f32 0.0, %v279
    %v281 = vpop.f32.mrb[0].mxu0
    %282 = vdwg.mxu0
    %283 = vset.pattern.permute.xlu0 3
    %284 = vperm.xlu0 %283, %v38
    %v285 = vpop.permute.xlu0 %284
    %vm286 = vcmp.eq.s32.totalorder %v44, %v285
    %v287 = vsel %vm286, 1, 0
    %v288 = vcvt.s32.f32 %v287
    %v290 = vsel %vm51, %v288, 0
    %292 = vmatprep.subr.mxu0 0.0
    %293 = vmatpush1.msra.mxu0 %v39
    %294 = vmatprep.subr.mxu0 0.0
    %295 = vmatpush1.msra.mxu0 %v40
    %296 = vmatprep.subr.mxu0 0.0
    %297 = vmatpush1.msra.mxu0 %v41
    %298 = vmatprep.subr.mxu0 0.0
    %299 = vmatpush1.msra.mxu0 %v42
    %300 = vmatprep.subr.mxu0 0.0
    %301 = vmatpush1.msra.mxu0 0.0
    %302 = vmatprep.subr.mxu0 0.0
    %303 = vmatpush1.msra.mxu0 0.0
    %304 = vmatprep.subr.mxu0 0.0
    %305 = vmatpush1.msra.mxu0 0.0
    %306 = vmatprep.subr.mxu0 0.0
    %307 = vmatpush1.msra.mxu0 0.0
    %308 = vmatprep.subr.mxu0 0.0
    %309 = vmatpush1.msra.mxu0 0.0
    %310 = vmatprep.subr.mxu0 0.0
    %311 = vmatpush1.msra.mxu0 0.0
    %312 = vmatprep.subr.mxu0 0.0
    %313 = vmatpush1.msra.mxu0 0.0
    %314 = vmatprep.subr.mxu0 0.0
    %315 = vmatpush1.msra.mxu0 0.0
    %316 = vmatprep.subr.mxu0 0.0
    %317 = vmatpush1.msra.mxu0 0.0
    %318 = vmatprep.subr.mxu0 0.0
    %319 = vmatpush1.msra.mxu0 0.0
    %320 = vmatprep.subr.mxu0 0.0
    %321 = vmatpush1.msra.mxu0 0.0
    %322 = vmatprep.subr.mxu0 0.0
    %323 = vmatpush1.msra.mxu0 0.0
    %324 = vmatprep.subr.mxu0 0.0
    %325 = vmatpush1.msra.mxu0 0.0
    %326 = vmatprep.subr.mxu0 0.0
    %327 = vmatpush1.msra.mxu0 0.0
    %328 = vmatprep.subr.mxu0 0.0
    %329 = vmatpush1.msra.mxu0 0.0
    %330 = vmatprep.subr.mxu0 0.0
    %331 = vmatpush1.msra.mxu0 0.0
    %332 = vmatprep.subr.mxu0 0.0
    %333 = vmatpush1.msra.mxu0 0.0
    %334 = vmatprep.subr.mxu0 0.0
    %335 = vmatpush1.msra.mxu0 0.0
    %336 = vmatprep.subr.mxu0 0.0
    %337 = vmatpush1.msra.mxu0 0.0
    %338 = vmatprep.subr.mxu0 0.0
    %339 = vmatpush1.msra.mxu0 0.0
    %340 = vmatprep.subr.mxu0 0.0
    %341 = vmatpush1.msra.mxu0 0.0
    %342 = vmatprep.subr.mxu0 0.0
    %343 = vmatpush1.msra.mxu0 0.0
    %344 = vmatprep.subr.mxu0 0.0
    %345 = vmatpush1.msra.mxu0 0.0
    %346 = vmatprep.subr.mxu0 0.0
    %347 = vmatpush1.msra.mxu0 0.0
    %348 = vmatprep.subr.mxu0 0.0
    %349 = vmatpush1.msra.mxu0 0.0
    %350 = vmatprep.subr.mxu0 0.0
    %351 = vmatpush1.msra.mxu0 0.0
    %352 = vmatprep.subr.mxu0 0.0
    %353 = vmatpush1.msra.mxu0 0.0
    %354 = vmatprep.subr.mxu0 0.0
    %355 = vmatpush1.msra.mxu0 0.0
    %356 = vmatprep.mubr.f32.mxu0 0.0
    %357 = vmatmul.mubr.f32.gmra.mrb[0].mxu0 %v290
    %v358 = vpop.f32.mrb[0].mxu0
    %v359 = vadd.f32 0.0, %v358
    %v360 = vpop.f32.mrb[0].mxu0
    %361 = vdwg.mxu0
    %363 = vrot.lane.b32.xlu0 %v201, 32
    %v364 = vpop.permute.xlu0 %363
    %367 = vrot.lane.b32.xlu0 %v280, 64
    %v368 = vpop.permute.xlu0 %367
    %371 = vrot.lane.b32.xlu0 %v359, 96
    %v372 = vpop.permute.xlu0 %371
    %v374 = vsel %vm51, %v122, %v364
    %vm375 = vcmask 523264
    %v376 = vsel %vm375, %v374, %v368
    %vm377 = vcmask 785408
    %v378 = vsel %vm377, %v376, %v372
    %379 = vst [vmem:[#allocation7] sm:$0xf] %v378
    // Predicated region
    $region18: #{tpu_custom_call.1} parent=1 // pred_check
      _
    $region19: #{tpu_custom_call.1} parent=1 // pred_check_branch
      %381 = sbr.rel (0) target = $region21
    $region20: #{tpu_custom_call.1} parent=1 // pred_region
      %s383 = ssub.s32 64, 64
      %384 = vsyncadd [#allocation4], %s383
      %s386 = sshll.u32 [#allocation7], 4
      %s387 = int_to_ptr.vmem [resolvable:$true] %s386
      %389 = dma.vmem_to_hbm [thread:$0]  %s387, 64, %s2, [#allocation4]
    $region21: #{tpu_custom_call.1} parent=1 // pred_fallthru
      _
    // Predicated region
    $region22: #{tpu_custom_call.1} parent=1 // pred_check
      _
    $region23: #{tpu_custom_call.1} parent=1 // pred_check_branch
      %391 = sbr.rel (0) target = $region25
    $region24: #{tpu_custom_call.1} parent=1 // pred_region
      %392 = dma.done [#allocation4], 64
    $region25: #{tpu_custom_call.1} parent=1 // pred_fallthru
      _
    %393 = vsyncpa [#allocation3], 1
    %394 = vsyncpa [#allocation6], 1
    %395 = vsyncpa [#allocation4], 1

</llo_original>
